<compile_context>
chip_gen: v5e
topology: v5e:2x2
jax: 0.10.0
libtpu: 0.0.40
codegen_flags: <defaults>
</compile_context>

<pallas_src>
import functools

import jax
import jax.numpy as jnp
from jax.experimental import pallas as pl
from jax.experimental.pallas import tpu as pltpu


_LAYER_DIMS = [128, 64, 32, 5, 32, 64, 128]  # hidden sizes between input/output


def _round_up(x, m):
    return ((x + m - 1) // m) * m


def _cdiv(a, b):
    return (a + b - 1) // b


def _autoencoder_kernel(x_ref, w_ref, b_ref, out_ref):
    """x_ref: (bt, Dp)   w_ref: (L, Dp, Dp)   b_ref: (L, 1, Dp) (same dtype as w)."""
    n_layers = w_ref.shape[0]
    act_dtype = w_ref.dtype
    h = x_ref[...].astype(act_dtype)
    for li in range(n_layers):                      # static unrolled layer loop (8 layers)
        w = w_ref[li]                               # (Dp, Dp)
        b = b_ref[li]                               # (1, Dp)
        acc = jnp.dot(h, w, preferred_element_type=jnp.float32)   # MXU, f32 accumulate
        # Bias-add + ReLU stay in the activation dtype (bf16 on the production path;
        # exact f32 on the correctness path).  relu(0) = 0 keeps padded lanes at 0.
        h = jnp.maximum(acc.astype(act_dtype) + b, 0)
    # Final sigmoid in f32 on the EUP, stored in the streamed dtype.
    out_ref[...] = jax.nn.sigmoid(h.astype(jnp.float32)).astype(out_ref.dtype)


@functools.partial(jax.jit, static_argnames=("batch_tile",))
def autoencoder_forward(x, w_slab, b_slab, *, batch_tile=2048):
    """x: [B, D].  w_slab: [L, Dp, Dp].  b_slab: [L, 1, Dp] (same dtype as w_slab)."""
    B, D = x.shape
    n_layers, Dp, _ = w_slab.shape
    assert D <= Dp and Dp % 128 == 0

    orig_dtype = x.dtype
    act_dtype = w_slab.dtype              # stream activations in the compute dtype
    x = x.astype(act_dtype)

    # Lane-dense feature padding (Dp is a multiple of 128).
    if D < Dp:
        x = jnp.pad(x, ((0, 0), (0, Dp - D)))

    # ---- Batch tiling ----------------------------------------------------
    # bt is a multiple of 8 (sublane).  Prefer >= 2 grid steps so the
    # "parallel" axis shards across both v7x TensorCores, then rebalance the
    # tile size so batch padding is minimal.
    B8 = _round_up(B, 8)
    bt = max(8, _round_up(int(batch_tile), 8))
    bt = min(bt, B8)
    if B8 >= 16:
        bt = min(bt, _round_up(_cdiv(B8, 2), 8))
    n_tiles = _cdiv(B8, bt)
    bt = _round_up(_cdiv(B8, n_tiles), 8)
    B_pad = n_tiles * bt
    if B_pad > B:
        x = jnp.pad(x, ((0, B_pad - B), (0, 0)))
    grid = (n_tiles,)

    # VMEM guard only for extreme tiles; default usage is a few MiB at most.
    vmem_limit = (64 << 20) if bt >= 8192 else None

    out = pl.pallas_call(
        _autoencoder_kernel,
        out_shape=jax.ShapeDtypeStruct((B_pad, Dp), act_dtype),
        grid=grid,
        in_specs=[
            pl.BlockSpec((bt, Dp), lambda i: (i, 0)),                 # x tile (streamed)
            pl.BlockSpec((n_layers, Dp, Dp), lambda i: (0, 0, 0)),    # weights (grid-constant)
            pl.BlockSpec((n_layers, 1, Dp), lambda i: (0, 0, 0)),     # biases (grid-constant)
        ],
        out_specs=pl.BlockSpec((bt, Dp), lambda i: (i, 0)),
        compiler_params=pltpu.CompilerParams(
            dimension_semantics=("parallel",),
            vmem_limit_bytes=vmem_limit,
        ),
    )(x, w_slab, b_slab)

    return out[:B, :D].astype(orig_dtype)


def make_params(key, input_dim):
    """PyTorch-style Linear init. Weights stored as (in, out); bias (1, out)."""
    dims = [input_dim] + _LAYER_DIMS + [input_dim]
    params = []
    for i in range(len(dims) - 1):
        fan_in, fan_out = dims[i], dims[i + 1]
        key, kw, kb = jax.random.split(key, 3)
        bound = 1.0 / jnp.sqrt(fan_in)
        w = jax.random.uniform(kw, (fan_in, fan_out), jnp.float32, -bound, bound)
        b = jax.random.uniform(kb, (1, fan_out), jnp.float32, -bound, bound)
        params += [w, b]
    return params


def pack_params(params, input_dim, compute_dtype=jnp.bfloat16):
    """Pack the 8 (in,out) weights into a [L, Dp, Dp] slab and biases into [L, 1, Dp]."""
    dims = [input_dim] + _LAYER_DIMS + [input_dim]
    n_layers = len(dims) - 1
    Dp = _round_up(max(dims), 128)
    w_slab = jnp.zeros((n_layers, Dp, Dp), compute_dtype)
    b_slab = jnp.zeros((n_layers, 1, Dp), compute_dtype)
    for i in range(n_layers):
        w = params[2 * i]
        b = params[2 * i + 1]
        w_slab = w_slab.at[i, : dims[i], : dims[i + 1]].set(w.astype(compute_dtype))
        b_slab = b_slab.at[i, 0, : dims[i + 1]].set(b.reshape(-1).astype(compute_dtype))
    return w_slab, b_slab


def reference_forward(x, params):
    h = x
    for i in range(len(params) // 2):
        h = jnp.maximum(h @ params[2 * i] + params[2 * i + 1], 0.0)
    return jax.nn.sigmoid(h)


if __name__ == "__main__":
    key = jax.random.PRNGKey(0)
    k_x, k_p, k_x2 = jax.random.split(key, 3)

    input_dim = 64
    params = make_params(k_p, input_dim)
    w_f32, b_f32 = pack_params(params, input_dim, compute_dtype=jnp.float32)

    # Strict correctness check (f32 weights + f32 activation streaming), 1 tile.
    x_small = jax.random.normal(k_x, (8, input_dim), jnp.float32)
    ref_small = reference_forward(x_small, params)
    out_small = jax.block_until_ready(autoencoder_forward(x_small, w_f32, b_f32))
    assert out_small.shape == (8, input_dim)
    assert jnp.allclose(out_small, ref_small, atol=1e-5, rtol=1e-5), "f32 mismatch (B=8)"

    # Strict correctness check exercising the multi-tile grid + batch padding path.
    x_mid = jax.random.normal(k_x2, (40, input_dim), jnp.float32)
    ref_mid = reference_forward(x_mid, params)
    out_mid = jax.block_until_ready(autoencoder_forward(x_mid, w_f32, b_f32))
    assert out_mid.shape == (40, input_dim)
    assert jnp.allclose(out_mid, ref_mid, atol=1e-5, rtol=1e-5), "f32 mismatch (B=40)"

    # Production path: bf16 weights + bf16 activation streaming (v6e/v7x MXU-native).
    w_bf16, b_bf16 = pack_params(params, input_dim, compute_dtype=jnp.bfloat16)
    out_bf16 = jax.block_until_ready(autoencoder_forward(x_mid, w_bf16, b_bf16))
    assert out_bf16.shape == (40, input_dim)
    assert jnp.allclose(out_bf16, ref_mid, atol=5e-2, rtol=5e-2), "bf16 mismatch vs reference"

    print("KERNEL_OK")
</pallas_src>

<mosaic_0001>
module attributes {stable_mosaic.version = 11 : i64} {
  func.func @_autoencoder_kernel(%arg0: i32, %arg1: memref<8x128xf32, #tpu.memory_space<vmem>>, %arg2: memref<8x128x128xf32, #tpu.memory_space<vmem>>, %arg3: memref<8x1x128xf32, #tpu.memory_space<vmem>>, %arg4: memref<8x128xf32, #tpu.memory_space<vmem>>) attributes {dimension_semantics = [#tpu.dimension_semantics<parallel>], iteration_bounds = array<i64: 1>, scalar_prefetch = 0 : i64, scratch_operands = 0 : i64, tpu.core_type = #tpu.core_type<tc>, window_params = [{transform_indices = @transform_0, window_bounds = array<i64: 8, 128>}, {pipeline_mode = #tpu.pipeline_mode<synchronous>, transform_indices = @transform_1, window_bounds = array<i64: 8, 128, 128>}, {pipeline_mode = #tpu.pipeline_mode<synchronous>, transform_indices = @transform_2, window_bounds = array<i64: 8, 1, 128>}, {transform_indices = @transform_3, window_bounds = array<i64: 8, 128>}]} {
    %c0 = arith.constant 0 : index
    %c0_0 = arith.constant 0 : index
    %0 = vector.load %arg1[%c0, %c0_0] : memref<8x128xf32, #tpu.memory_space<vmem>>, vector<8x128xf32>
    %c0_1 = arith.constant 0 : index
    %c0_2 = arith.constant 0 : index
    %c0_3 = arith.constant 0 : index
    %1 = vector.load %arg2[%c0_1, %c0_2, %c0_3] : memref<8x128x128xf32, #tpu.memory_space<vmem>>, vector<1x128x128xf32>
    %2 = vector.shape_cast %1 : vector<1x128x128xf32> to vector<128x128xf32>
    %c0_4 = arith.constant 0 : index
    %c0_5 = arith.constant 0 : index
    %c0_6 = arith.constant 0 : index
    %3 = vector.load %arg3[%c0_4, %c0_5, %c0_6] : memref<8x1x128xf32, #tpu.memory_space<vmem>>, vector<1x1x128xf32>
    %4 = vector.shape_cast %3 : vector<1x1x128xf32> to vector<1x128xf32>
    %cst = arith.constant dense<0.000000e+00> : vector<8x128xf32>
    %5 = tpu.matmul %0, %2, %cst {dimension_numbers = #tpu.dot_dimension_numbers<[1], [0], [0], [1], [0, 0, 1, 1], [], []>} : vector<8x128xf32>, vector<128x128xf32>, vector<8x128xf32> -> vector<8x128xf32>
    %6 = vector.broadcast %4 : vector<1x128xf32> to vector<8x128xf32>
    %7 = arith.addf %5, %6 : vector<8x128xf32>
    %cst_7 = arith.constant 0.000000e+00 : f32
    %8 = vector.broadcast %cst_7 : f32 to vector<8x128xf32>
    %9 = arith.maximumf %7, %8 : vector<8x128xf32>
    %c1 = arith.constant 1 : index
    %c0_8 = arith.constant 0 : index
    %c0_9 = arith.constant 0 : index
    %10 = vector.load %arg2[%c1, %c0_8, %c0_9] : memref<8x128x128xf32, #tpu.memory_space<vmem>>, vector<1x128x128xf32>
    %11 = vector.shape_cast %10 : vector<1x128x128xf32> to vector<128x128xf32>
    %c1_10 = arith.constant 1 : index
    %c0_11 = arith.constant 0 : index
    %c0_12 = arith.constant 0 : index
    %12 = vector.load %arg3[%c1_10, %c0_11, %c0_12] : memref<8x1x128xf32, #tpu.memory_space<vmem>>, vector<1x1x128xf32>
    %13 = vector.shape_cast %12 : vector<1x1x128xf32> to vector<1x128xf32>
    %cst_13 = arith.constant dense<0.000000e+00> : vector<8x128xf32>
    %14 = tpu.matmul %9, %11, %cst_13 {dimension_numbers = #tpu.dot_dimension_numbers<[1], [0], [0], [1], [0, 0, 1, 1], [], []>} : vector<8x128xf32>, vector<128x128xf32>, vector<8x128xf32> -> vector<8x128xf32>
    %15 = vector.broadcast %13 : vector<1x128xf32> to vector<8x128xf32>
    %16 = arith.addf %14, %15 : vector<8x128xf32>
    %cst_14 = arith.constant 0.000000e+00 : f32
    %17 = vector.broadcast %cst_14 : f32 to vector<8x128xf32>
    %18 = arith.maximumf %16, %17 : vector<8x128xf32>
    %c2 = arith.constant 2 : index
    %c0_15 = arith.constant 0 : index
    %c0_16 = arith.constant 0 : index
    %19 = vector.load %arg2[%c2, %c0_15, %c0_16] : memref<8x128x128xf32, #tpu.memory_space<vmem>>, vector<1x128x128xf32>
    %20 = vector.shape_cast %19 : vector<1x128x128xf32> to vector<128x128xf32>
    %c2_17 = arith.constant 2 : index
    %c0_18 = arith.constant 0 : index
    %c0_19 = arith.constant 0 : index
    %21 = vector.load %arg3[%c2_17, %c0_18, %c0_19] : memref<8x1x128xf32, #tpu.memory_space<vmem>>, vector<1x1x128xf32>
    %22 = vector.shape_cast %21 : vector<1x1x128xf32> to vector<1x128xf32>
    %cst_20 = arith.constant dense<0.000000e+00> : vector<8x128xf32>
    %23 = tpu.matmul %18, %20, %cst_20 {dimension_numbers = #tpu.dot_dimension_numbers<[1], [0], [0], [1], [0, 0, 1, 1], [], []>} : vector<8x128xf32>, vector<128x128xf32>, vector<8x128xf32> -> vector<8x128xf32>
    %24 = vector.broadcast %22 : vector<1x128xf32> to vector<8x128xf32>
    %25 = arith.addf %23, %24 : vector<8x128xf32>
    %cst_21 = arith.constant 0.000000e+00 : f32
    %26 = vector.broadcast %cst_21 : f32 to vector<8x128xf32>
    %27 = arith.maximumf %25, %26 : vector<8x128xf32>
    %c3 = arith.constant 3 : index
    %c0_22 = arith.constant 0 : index
    %c0_23 = arith.constant 0 : index
    %28 = vector.load %arg2[%c3, %c0_22, %c0_23] : memref<8x128x128xf32, #tpu.memory_space<vmem>>, vector<1x128x128xf32>
    %29 = vector.shape_cast %28 : vector<1x128x128xf32> to vector<128x128xf32>
    %c3_24 = arith.constant 3 : index
    %c0_25 = arith.constant 0 : index
    %c0_26 = arith.constant 0 : index
    %30 = vector.load %arg3[%c3_24, %c0_25, %c0_26] : memref<8x1x128xf32, #tpu.memory_space<vmem>>, vector<1x1x128xf32>
    %31 = vector.shape_cast %30 : vector<1x1x128xf32> to vector<1x128xf32>
    %cst_27 = arith.constant dense<0.000000e+00> : vector<8x128xf32>
    %32 = tpu.matmul %27, %29, %cst_27 {dimension_numbers = #tpu.dot_dimension_numbers<[1], [0], [0], [1], [0, 0, 1, 1], [], []>} : vector<8x128xf32>, vector<128x128xf32>, vector<8x128xf32> -> vector<8x128xf32>
    %33 = vector.broadcast %31 : vector<1x128xf32> to vector<8x128xf32>
    %34 = arith.addf %32, %33 : vector<8x128xf32>
    %cst_28 = arith.constant 0.000000e+00 : f32
    %35 = vector.broadcast %cst_28 : f32 to vector<8x128xf32>
    %36 = arith.maximumf %34, %35 : vector<8x128xf32>
    %c4 = arith.constant 4 : index
    %c0_29 = arith.constant 0 : index
    %c0_30 = arith.constant 0 : index
    %37 = vector.load %arg2[%c4, %c0_29, %c0_30] : memref<8x128x128xf32, #tpu.memory_space<vmem>>, vector<1x128x128xf32>
    %38 = vector.shape_cast %37 : vector<1x128x128xf32> to vector<128x128xf32>
    %c4_31 = arith.constant 4 : index
    %c0_32 = arith.constant 0 : index
    %c0_33 = arith.constant 0 : index
    %39 = vector.load %arg3[%c4_31, %c0_32, %c0_33] : memref<8x1x128xf32, #tpu.memory_space<vmem>>, vector<1x1x128xf32>
    %40 = vector.shape_cast %39 : vector<1x1x128xf32> to vector<1x128xf32>
    %cst_34 = arith.constant dense<0.000000e+00> : vector<8x128xf32>
    %41 = tpu.matmul %36, %38, %cst_34 {dimension_numbers = #tpu.dot_dimension_numbers<[1], [0], [0], [1], [0, 0, 1, 1], [], []>} : vector<8x128xf32>, vector<128x128xf32>, vector<8x128xf32> -> vector<8x128xf32>
    %42 = vector.broadcast %40 : vector<1x128xf32> to vector<8x128xf32>
    %43 = arith.addf %41, %42 : vector<8x128xf32>
    %cst_35 = arith.constant 0.000000e+00 : f32
    %44 = vector.broadcast %cst_35 : f32 to vector<8x128xf32>
    %45 = arith.maximumf %43, %44 : vector<8x128xf32>
    %c5 = arith.constant 5 : index
    %c0_36 = arith.constant 0 : index
    %c0_37 = arith.constant 0 : index
    %46 = vector.load %arg2[%c5, %c0_36, %c0_37] : memref<8x128x128xf32, #tpu.memory_space<vmem>>, vector<1x128x128xf32>
    %47 = vector.shape_cast %46 : vector<1x128x128xf32> to vector<128x128xf32>
    %c5_38 = arith.constant 5 : index
    %c0_39 = arith.constant 0 : index
    %c0_40 = arith.constant 0 : index
    %48 = vector.load %arg3[%c5_38, %c0_39, %c0_40] : memref<8x1x128xf32, #tpu.memory_space<vmem>>, vector<1x1x128xf32>
    %49 = vector.shape_cast %48 : vector<1x1x128xf32> to vector<1x128xf32>
    %cst_41 = arith.constant dense<0.000000e+00> : vector<8x128xf32>
    %50 = tpu.matmul %45, %47, %cst_41 {dimension_numbers = #tpu.dot_dimension_numbers<[1], [0], [0], [1], [0, 0, 1, 1], [], []>} : vector<8x128xf32>, vector<128x128xf32>, vector<8x128xf32> -> vector<8x128xf32>
    %51 = vector.broadcast %49 : vector<1x128xf32> to vector<8x128xf32>
    %52 = arith.addf %50, %51 : vector<8x128xf32>
    %cst_42 = arith.constant 0.000000e+00 : f32
    %53 = vector.broadcast %cst_42 : f32 to vector<8x128xf32>
    %54 = arith.maximumf %52, %53 : vector<8x128xf32>
    %c6 = arith.constant 6 : index
    %c0_43 = arith.constant 0 : index
    %c0_44 = arith.constant 0 : index
    %55 = vector.load %arg2[%c6, %c0_43, %c0_44] : memref<8x128x128xf32, #tpu.memory_space<vmem>>, vector<1x128x128xf32>
    %56 = vector.shape_cast %55 : vector<1x128x128xf32> to vector<128x128xf32>
    %c6_45 = arith.constant 6 : index
    %c0_46 = arith.constant 0 : index
    %c0_47 = arith.constant 0 : index
    %57 = vector.load %arg3[%c6_45, %c0_46, %c0_47] : memref<8x1x128xf32, #tpu.memory_space<vmem>>, vector<1x1x128xf32>
    %58 = vector.shape_cast %57 : vector<1x1x128xf32> to vector<1x128xf32>
    %cst_48 = arith.constant dense<0.000000e+00> : vector<8x128xf32>
    %59 = tpu.matmul %54, %56, %cst_48 {dimension_numbers = #tpu.dot_dimension_numbers<[1], [0], [0], [1], [0, 0, 1, 1], [], []>} : vector<8x128xf32>, vector<128x128xf32>, vector<8x128xf32> -> vector<8x128xf32>
    %60 = vector.broadcast %58 : vector<1x128xf32> to vector<8x128xf32>
    %61 = arith.addf %59, %60 : vector<8x128xf32>
    %cst_49 = arith.constant 0.000000e+00 : f32
    %62 = vector.broadcast %cst_49 : f32 to vector<8x128xf32>
    %63 = arith.maximumf %61, %62 : vector<8x128xf32>
    %c7 = arith.constant 7 : index
    %c0_50 = arith.constant 0 : index
    %c0_51 = arith.constant 0 : index
    %64 = vector.load %arg2[%c7, %c0_50, %c0_51] : memref<8x128x128xf32, #tpu.memory_space<vmem>>, vector<1x128x128xf32>
    %65 = vector.shape_cast %64 : vector<1x128x128xf32> to vector<128x128xf32>
    %c7_52 = arith.constant 7 : index
    %c0_53 = arith.constant 0 : index
    %c0_54 = arith.constant 0 : index
    %66 = vector.load %arg3[%c7_52, %c0_53, %c0_54] : memref<8x1x128xf32, #tpu.memory_space<vmem>>, vector<1x1x128xf32>
    %67 = vector.shape_cast %66 : vector<1x1x128xf32> to vector<1x128xf32>
    %cst_55 = arith.constant dense<0.000000e+00> : vector<8x128xf32>
    %68 = tpu.matmul %63, %65, %cst_55 {dimension_numbers = #tpu.dot_dimension_numbers<[1], [0], [0], [1], [0, 0, 1, 1], [], []>} : vector<8x128xf32>, vector<128x128xf32>, vector<8x128xf32> -> vector<8x128xf32>
    %69 = vector.broadcast %67 : vector<1x128xf32> to vector<8x128xf32>
    %70 = arith.addf %68, %69 : vector<8x128xf32>
    %cst_56 = arith.constant 0.000000e+00 : f32
    %71 = vector.broadcast %cst_56 : f32 to vector<8x128xf32>
    %72 = arith.maximumf %70, %71 : vector<8x128xf32>
    %73 = arith.negf %72 : vector<8x128xf32>
    %74 = math.exp %73 : vector<8x128xf32>
    %cst_57 = arith.constant 1.000000e+00 : f32
    %75 = vector.broadcast %cst_57 : f32 to vector<8x128xf32>
    %76 = arith.addf %75, %74 : vector<8x128xf32>
    %77 = arith.divf %75, %76 : vector<8x128xf32>
    %c0_58 = arith.constant 0 : index
    %c0_59 = arith.constant 0 : index
    %78 = vector.load %arg4[%c0_58, %c0_59] : memref<8x128xf32, #tpu.memory_space<vmem>>, vector<8x128xf32>
    tpu.vector_store %arg4[%c0_58, %c0_59], %77 {strides = array<i32>} : memref<8x128xf32, #tpu.memory_space<vmem>>, vector<8x128xf32>,
    return
  }
  func.func @transform_0(%arg0: i32) -> (i32, i32) {
    %c0_i32 = arith.constant 0 : i32
    %c0_i32_0 = arith.constant 0 : i32
    return %arg0, %c0_i32 : i32, i32
  }
  func.func @transform_1(%arg0: i32) -> (i32, i32, i32) {
    %c0_i32 = arith.constant 0 : i32
    %c0_i32_0 = arith.constant 0 : i32
    %c0_i32_1 = arith.constant 0 : i32
    %c0_i32_2 = arith.constant 0 : i32
    return %c0_i32, %c0_i32_0, %c0_i32_1 : i32, i32, i32
  }
  func.func @transform_2(%arg0: i32) -> (i32, i32, i32) {
    %c0_i32 = arith.constant 0 : i32
    %c0_i32_0 = arith.constant 0 : i32
    %c0_i32_1 = arith.constant 0 : i32
    %c0_i32_2 = arith.constant 0 : i32
    return %c0_i32, %c0_i32_0, %c0_i32_1 : i32, i32, i32
  }
  func.func @transform_3(%arg0: i32) -> (i32, i32) {
    %c0_i32 = arith.constant 0 : i32
    %c0_i32_0 = arith.constant 0 : i32
    return %arg0, %c0_i32 : i32, i32
  }
}

</mosaic_0001>

<llo_original>
// kernel: autoencoder_forward.1
$region0: #{autoencoder_forward.1}
  #allocation0 [shape = 'u32[]', space=smem, size = 0x4, offset = 0x4, fixed_abs, tag = 'smem constant byte address 0x4 - core index']
  #allocation1 [shape = 'u32[72,128]{1,0:T(1,128)}', space=vmem, size = 0x9000, scoped, tag = 'internal scratch']
  %s0 = inlined_call_operand.vmem [shape: f32[8,128], index: 0, kind: input, shape index: {}]
  %s1 = inlined_call_operand.hbm [shape: f32[8,128,128], index: 1, kind: input, shape index: {}]
  %s2 = inlined_call_operand.vmem [shape: f32[8,1,128], index: 2, kind: input, shape index: {}]
  %s3 = inlined_call_operand.hbm [shape: f32[8,128], index: 3, kind: output, shape index: {}]
  %s4 = sld [smem:[#allocation0]]
  $region26: #{autoencoder_forward.1} parent=0
    _
  %s6 = ssub.s32 1, %s4
  %s7 = scalar_select 0, %s6, %s4
  $region1: #{autoencoder_forward.1} parent=0
    #allocation2 [shape = 'u8[524288]{0}', space=vmem, size = 0x80000, scoped, tag = 'input window, operand 1, single buffered']
    #allocation3 [shape = 's32[1]{0}', space=sflag, size = 0x4, scoped, tag = 'scoped memory for autoencoder_forward.1']
    #allocation4 [shape = 's32[1]{0}', space=sflag, size = 0x4, scoped, tag = 'scoped memory for autoencoder_forward.1']
    #allocation5 [shape = 'u8[4096]{0}', space=vmem, size = 0x1000, scoped, tag = 'output window, operand 0, single buffered']
    %8 = vsyncpa [#allocation3], 0
    %9 = vsyncpa [#allocation4], 0
    // Predicated region
    $region2: #{autoencoder_forward.1} parent=1 // pred_check
      _
    $region3: #{autoencoder_forward.1} parent=1 // pred_check_branch
      %11 = sbr.rel (0) target = $region5
    $region4: #{autoencoder_forward.1} parent=1 // pred_region
      _
    $region5: #{autoencoder_forward.1} parent=1 // pred_fallthru
      _
    // Predicated region
    $region6: #{autoencoder_forward.1} parent=1 // pred_check
      _
    $region7: #{autoencoder_forward.1} parent=1 // pred_check_branch
      %13 = sbr.rel (0) target = $region9
    $region8: #{autoencoder_forward.1} parent=1 // pred_region
      %15 = vsyncadd [#allocation3], 0
      %s16 = sshll.u32 %s1, 4
      %s17 = int_to_ptr.hbm [resolvable:$true] %s16
      %s18 = sshll.u32 [#allocation2], 4
      %s19 = int_to_ptr.vmem [resolvable:$true] %s18
      %24 = dma.hbm_to_vmem [thread:$0]  %s17, 16384, %s19, [#allocation3], 128, 128, 8
    $region9: #{autoencoder_forward.1} parent=1 // pred_fallthru
      _
    // Predicated region
    $region10: #{autoencoder_forward.1} parent=1 // pred_check
      _
    $region11: #{autoencoder_forward.1} parent=1 // pred_check_branch
      %26 = sbr.rel (0) target = $region13
    $region12: #{autoencoder_forward.1} parent=1 // pred_region
      _
    $region13: #{autoencoder_forward.1} parent=1 // pred_fallthru
      _
    // Predicated region
    $region14: #{autoencoder_forward.1} parent=1 // pred_check
      _
    $region15: #{autoencoder_forward.1} parent=1 // pred_check_branch
      %28 = sbr.rel (0) target = $region17
    $region16: #{autoencoder_forward.1} parent=1 // pred_region
      %30 = dma.done [#allocation3], 16384
    $region17: #{autoencoder_forward.1} parent=1 // pred_fallthru
      _
    %v31 = vld [vmem:[%s0] sm:$0xff]
    %v32 = vld [vmem:[#allocation2] sm:$0xff]
    %v33 = vld [vmem:[#allocation2 + $0x8] sm:$0xff]
    %v34 = vld [vmem:[#allocation2 + $0x10] sm:$0xff]
    %v35 = vld [vmem:[#allocation2 + $0x18] sm:$0xff]
    %v36 = vld [vmem:[#allocation2 + $0x20] sm:$0xff]
    %v37 = vld [vmem:[#allocation2 + $0x28] sm:$0xff]
    %v38 = vld [vmem:[#allocation2 + $0x30] sm:$0xff]
    %v39 = vld [vmem:[#allocation2 + $0x38] sm:$0xff]
    %v40 = vld [vmem:[#allocation2 + $0x40] sm:$0xff]
    %v41 = vld [vmem:[#allocation2 + $0x48] sm:$0xff]
    %v42 = vld [vmem:[#allocation2 + $0x50] sm:$0xff]
    %v43 = vld [vmem:[#allocation2 + $0x58] sm:$0xff]
    %v44 = vld [vmem:[#allocation2 + $0x60] sm:$0xff]
    %v45 = vld [vmem:[#allocation2 + $0x68] sm:$0xff]
    %v46 = vld [vmem:[#allocation2 + $0x70] sm:$0xff]
    %v47 = vld [vmem:[#allocation2 + $0x78] sm:$0xff]
    %v48 = vld [vmem:[%s2] sm:$0x1]
    %v50 = vperm.slane %v48, 0
    %52 = vmatpush.msra.mxu0 %v47
    %53 = vmatpush.msra.mxu0 %v46
    %54 = vmatpush.msra.mxu0 %v45
    %55 = vmatpush.msra.mxu0 %v44
    %56 = vmatpush.msra.mxu0 %v43
    %57 = vmatpush.msra.mxu0 %v42
    %58 = vmatpush.msra.mxu0 %v41
    %59 = vmatpush.msra.mxu0 %v40
    %60 = vmatpush.msra.mxu0 %v39
    %61 = vmatpush.msra.mxu0 %v38
    %62 = vmatpush.msra.mxu0 %v37
    %63 = vmatpush.msra.mxu0 %v36
    %64 = vmatpush.msra.mxu0 %v35
    %65 = vmatpush.msra.mxu0 %v34
    %66 = vmatpush.msra.mxu0 %v33
    %67 = vmatpush.msra.mxu0 %v32
    %68 = vmatmul.f32.gmra.mxu0 %v31
    %v69 = vpop.f32.mrf.mxu0
    %v70 = vadd.f32 %v50, %v69
    %71 = vdwg.mxu0
    %v72 = vmax.f32 %v70, 0.0
    %s73 = scalar_lea.vmem [#allocation2], 128
    %v74 = vld [vmem:[%s73] sm:$0xff]
    %v75 = vld [vmem:[%s73 + $0x8] sm:$0xff]
    %v76 = vld [vmem:[%s73 + $0x10] sm:$0xff]
    %v77 = vld [vmem:[%s73 + $0x18] sm:$0xff]
    %v78 = vld [vmem:[%s73 + $0x20] sm:$0xff]
    %v79 = vld [vmem:[%s73 + $0x28] sm:$0xff]
    %v80 = vld [vmem:[%s73 + $0x30] sm:$0xff]
    %v81 = vld [vmem:[%s73 + $0x38] sm:$0xff]
    %v82 = vld [vmem:[%s73 + $0x40] sm:$0xff]
    %v83 = vld [vmem:[%s73 + $0x48] sm:$0xff]
    %v84 = vld [vmem:[%s73 + $0x50] sm:$0xff]
    %v85 = vld [vmem:[%s73 + $0x58] sm:$0xff]
    %v86 = vld [vmem:[%s73 + $0x60] sm:$0xff]
    %v87 = vld [vmem:[%s73 + $0x68] sm:$0xff]
    %v88 = vld [vmem:[%s73 + $0x70] sm:$0xff]
    %v89 = vld [vmem:[%s73 + $0x78] sm:$0xff]
    %s90 = scalar_lea.vmem %s2, 1
    %v91 = vld [vmem:[%s90] sm:$0x1]
    %v93 = vperm.slane %v91, 0
    %95 = vmatpush.msra.mxu0 %v89
    %96 = vmatpush.msra.mxu0 %v88
    %97 = vmatpush.msra.mxu0 %v87
    %98 = vmatpush.msra.mxu0 %v86
    %99 = vmatpush.msra.mxu0 %v85
    %100 = vmatpush.msra.mxu0 %v84
    %101 = vmatpush.msra.mxu0 %v83
    %102 = vmatpush.msra.mxu0 %v82
    %103 = vmatpush.msra.mxu0 %v81
    %104 = vmatpush.msra.mxu0 %v80
    %105 = vmatpush.msra.mxu0 %v79
    %106 = vmatpush.msra.mxu0 %v78
    %107 = vmatpush.msra.mxu0 %v77
    %108 = vmatpush.msra.mxu0 %v76
    %109 = vmatpush.msra.mxu0 %v75
    %110 = vmatpush.msra.mxu0 %v74
    %111 = vmatmul.f32.gmra.mxu0 %v72
    %v112 = vpop.f32.mrf.mxu0
    %v113 = vadd.f32 %v93, %v112
    %114 = vdwg.mxu0
    %v115 = vmax.f32 %v113, 0.0
    %s116 = scalar_lea.vmem [#allocation2], 256
    %v117 = vld [vmem:[%s116] sm:$0xff]
    %v118 = vld [vmem:[%s116 + $0x8] sm:$0xff]
    %v119 = vld [vmem:[%s116 + $0x10] sm:$0xff]
    %v120 = vld [vmem:[%s116 + $0x18] sm:$0xff]
    %v121 = vld [vmem:[%s116 + $0x20] sm:$0xff]
    %v122 = vld [vmem:[%s116 + $0x28] sm:$0xff]
    %v123 = vld [vmem:[%s116 + $0x30] sm:$0xff]
    %v124 = vld [vmem:[%s116 + $0x38] sm:$0xff]
    %v125 = vld [vmem:[%s116 + $0x40] sm:$0xff]
    %v126 = vld [vmem:[%s116 + $0x48] sm:$0xff]
    %v127 = vld [vmem:[%s116 + $0x50] sm:$0xff]
    %v128 = vld [vmem:[%s116 + $0x58] sm:$0xff]
    %v129 = vld [vmem:[%s116 + $0x60] sm:$0xff]
    %v130 = vld [vmem:[%s116 + $0x68] sm:$0xff]
    %v131 = vld [vmem:[%s116 + $0x70] sm:$0xff]
    %v132 = vld [vmem:[%s116 + $0x78] sm:$0xff]
    %s133 = scalar_lea.vmem %s2, 2
    %v134 = vld [vmem:[%s133] sm:$0x1]
    %v136 = vperm.slane %v134, 0
    %138 = vmatpush.msra.mxu0 %v132
    %139 = vmatpush.msra.mxu0 %v131
    %140 = vmatpush.msra.mxu0 %v130
    %141 = vmatpush.msra.mxu0 %v129
    %142 = vmatpush.msra.mxu0 %v128
    %143 = vmatpush.msra.mxu0 %v127
    %144 = vmatpush.msra.mxu0 %v126
    %145 = vmatpush.msra.mxu0 %v125
    %146 = vmatpush.msra.mxu0 %v124
    %147 = vmatpush.msra.mxu0 %v123
    %148 = vmatpush.msra.mxu0 %v122
    %149 = vmatpush.msra.mxu0 %v121
    %150 = vmatpush.msra.mxu0 %v120
    %151 = vmatpush.msra.mxu0 %v119
    %152 = vmatpush.msra.mxu0 %v118
    %153 = vmatpush.msra.mxu0 %v117
    %154 = vmatmul.f32.gmra.mxu0 %v115
    %v155 = vpop.f32.mrf.mxu0
    %v156 = vadd.f32 %v136, %v155
    %157 = vdwg.mxu0
    %v158 = vmax.f32 %v156, 0.0
    %s159 = scalar_lea.vmem [#allocation2], 384
    %v160 = vld [vmem:[%s159] sm:$0xff]
    %v161 = vld [vmem:[%s159 + $0x8] sm:$0xff]
    %v162 = vld [vmem:[%s159 + $0x10] sm:$0xff]
    %v163 = vld [vmem:[%s159 + $0x18] sm:$0xff]
    %v164 = vld [vmem:[%s159 + $0x20] sm:$0xff]
    %v165 = vld [vmem:[%s159 + $0x28] sm:$0xff]
    %v166 = vld [vmem:[%s159 + $0x30] sm:$0xff]
    %v167 = vld [vmem:[%s159 + $0x38] sm:$0xff]
    %v168 = vld [vmem:[%s159 + $0x40] sm:$0xff]
    %v169 = vld [vmem:[%s159 + $0x48] sm:$0xff]
    %v170 = vld [vmem:[%s159 + $0x50] sm:$0xff]
    %v171 = vld [vmem:[%s159 + $0x58] sm:$0xff]
    %v172 = vld [vmem:[%s159 + $0x60] sm:$0xff]
    %v173 = vld [vmem:[%s159 + $0x68] sm:$0xff]
    %v174 = vld [vmem:[%s159 + $0x70] sm:$0xff]
    %v175 = vld [vmem:[%s159 + $0x78] sm:$0xff]
    %s176 = scalar_lea.vmem %s2, 3
    %v177 = vld [vmem:[%s176] sm:$0x1]
    %v179 = vperm.slane %v177, 0
    %181 = vmatpush.msra.mxu0 %v175
    %182 = vmatpush.msra.mxu0 %v174
    %183 = vmatpush.msra.mxu0 %v173
    %184 = vmatpush.msra.mxu0 %v172
    %185 = vmatpush.msra.mxu0 %v171
    %186 = vmatpush.msra.mxu0 %v170
    %187 = vmatpush.msra.mxu0 %v169
    %188 = vmatpush.msra.mxu0 %v168
    %189 = vmatpush.msra.mxu0 %v167
    %190 = vmatpush.msra.mxu0 %v166
    %191 = vmatpush.msra.mxu0 %v165
    %192 = vmatpush.msra.mxu0 %v164
    %193 = vmatpush.msra.mxu0 %v163
    %194 = vmatpush.msra.mxu0 %v162
    %195 = vmatpush.msra.mxu0 %v161
    %196 = vmatpush.msra.mxu0 %v160
    %197 = vmatmul.f32.gmra.mxu0 %v158
    %v198 = vpop.f32.mrf.mxu0
    %v199 = vadd.f32 %v179, %v198
    %200 = vdwg.mxu0
    %v201 = vmax.f32 %v199, 0.0
    %s202 = scalar_lea.vmem [#allocation2], 512
    %v203 = vld [vmem:[%s202] sm:$0xff]
    %v204 = vld [vmem:[%s202 + $0x8] sm:$0xff]
    %v205 = vld [vmem:[%s202 + $0x10] sm:$0xff]
    %v206 = vld [vmem:[%s202 + $0x18] sm:$0xff]
    %v207 = vld [vmem:[%s202 + $0x20] sm:$0xff]
    %v208 = vld [vmem:[%s202 + $0x28] sm:$0xff]
    %v209 = vld [vmem:[%s202 + $0x30] sm:$0xff]
    %v210 = vld [vmem:[%s202 + $0x38] sm:$0xff]
    %v211 = vld [vmem:[%s202 + $0x40] sm:$0xff]
    %v212 = vld [vmem:[%s202 + $0x48] sm:$0xff]
    %v213 = vld [vmem:[%s202 + $0x50] sm:$0xff]
    %v214 = vld [vmem:[%s202 + $0x58] sm:$0xff]
    %v215 = vld [vmem:[%s202 + $0x60] sm:$0xff]
    %v216 = vld [vmem:[%s202 + $0x68] sm:$0xff]
    %v217 = vld [vmem:[%s202 + $0x70] sm:$0xff]
    %v218 = vld [vmem:[%s202 + $0x78] sm:$0xff]
    %s219 = scalar_lea.vmem %s2, 4
    %v220 = vld [vmem:[%s219] sm:$0x1]
    %v222 = vperm.slane %v220, 0
    %224 = vmatpush.msra.mxu0 %v218
    %225 = vmatpush.msra.mxu0 %v217
    %226 = vmatpush.msra.mxu0 %v216
    %227 = vmatpush.msra.mxu0 %v215
    %228 = vmatpush.msra.mxu0 %v214
    %229 = vmatpush.msra.mxu0 %v213
    %230 = vmatpush.msra.mxu0 %v212
    %231 = vmatpush.msra.mxu0 %v211
    %232 = vmatpush.msra.mxu0 %v210
    %233 = vmatpush.msra.mxu0 %v209
    %234 = vmatpush.msra.mxu0 %v208
    %235 = vmatpush.msra.mxu0 %v207
    %236 = vmatpush.msra.mxu0 %v206
    %237 = vmatpush.msra.mxu0 %v205
    %238 = vmatpush.msra.mxu0 %v204
    %239 = vmatpush.msra.mxu0 %v203
    %240 = vmatmul.f32.gmra.mxu0 %v201
    %v241 = vpop.f32.mrf.mxu0
    %v242 = vadd.f32 %v222, %v241
    %243 = vdwg.mxu0
    %v244 = vmax.f32 %v242, 0.0
    %s245 = scalar_lea.vmem [#allocation2], 640
    %v246 = vld [vmem:[%s245] sm:$0xff]
    %v247 = vld [vmem:[%s245 + $0x8] sm:$0xff]
    %v248 = vld [vmem:[%s245 + $0x10] sm:$0xff]
    %v249 = vld [vmem:[%s245 + $0x18] sm:$0xff]
    %v250 = vld [vmem:[%s245 + $0x20] sm:$0xff]
    %v251 = vld [vmem:[%s245 + $0x28] sm:$0xff]
    %v252 = vld [vmem:[%s245 + $0x30] sm:$0xff]
    %v253 = vld [vmem:[%s245 + $0x38] sm:$0xff]
    %v254 = vld [vmem:[%s245 + $0x40] sm:$0xff]
    %v255 = vld [vmem:[%s245 + $0x48] sm:$0xff]
    %v256 = vld [vmem:[%s245 + $0x50] sm:$0xff]
    %v257 = vld [vmem:[%s245 + $0x58] sm:$0xff]
    %v258 = vld [vmem:[%s245 + $0x60] sm:$0xff]
    %v259 = vld [vmem:[%s245 + $0x68] sm:$0xff]
    %v260 = vld [vmem:[%s245 + $0x70] sm:$0xff]
    %v261 = vld [vmem:[%s245 + $0x78] sm:$0xff]
    %s262 = scalar_lea.vmem %s2, 5
    %v263 = vld [vmem:[%s262] sm:$0x1]
    %v265 = vperm.slane %v263, 0
    %267 = vmatpush.msra.mxu0 %v261
    %268 = vmatpush.msra.mxu0 %v260
    %269 = vmatpush.msra.mxu0 %v259
    %270 = vmatpush.msra.mxu0 %v258
    %271 = vmatpush.msra.mxu0 %v257
    %272 = vmatpush.msra.mxu0 %v256
    %273 = vmatpush.msra.mxu0 %v255
    %274 = vmatpush.msra.mxu0 %v254
    %275 = vmatpush.msra.mxu0 %v253
    %276 = vmatpush.msra.mxu0 %v252
    %277 = vmatpush.msra.mxu0 %v251
    %278 = vmatpush.msra.mxu0 %v250
    %279 = vmatpush.msra.mxu0 %v249
    %280 = vmatpush.msra.mxu0 %v248
    %281 = vmatpush.msra.mxu0 %v247
    %282 = vmatpush.msra.mxu0 %v246
    %283 = vmatmul.f32.gmra.mxu0 %v244
    %v284 = vpop.f32.mrf.mxu0
    %v285 = vadd.f32 %v265, %v284
    %286 = vdwg.mxu0
    %v287 = vmax.f32 %v285, 0.0
    %s288 = scalar_lea.vmem [#allocation2], 768
    %v289 = vld [vmem:[%s288] sm:$0xff]
    %v290 = vld [vmem:[%s288 + $0x8] sm:$0xff]
    %v291 = vld [vmem:[%s288 + $0x10] sm:$0xff]
    %v292 = vld [vmem:[%s288 + $0x18] sm:$0xff]
    %v293 = vld [vmem:[%s288 + $0x20] sm:$0xff]
    %v294 = vld [vmem:[%s288 + $0x28] sm:$0xff]
    %v295 = vld [vmem:[%s288 + $0x30] sm:$0xff]
    %v296 = vld [vmem:[%s288 + $0x38] sm:$0xff]
    %v297 = vld [vmem:[%s288 + $0x40] sm:$0xff]
    %v298 = vld [vmem:[%s288 + $0x48] sm:$0xff]
    %v299 = vld [vmem:[%s288 + $0x50] sm:$0xff]
    %v300 = vld [vmem:[%s288 + $0x58] sm:$0xff]
    %v301 = vld [vmem:[%s288 + $0x60] sm:$0xff]
    %v302 = vld [vmem:[%s288 + $0x68] sm:$0xff]
    %v303 = vld [vmem:[%s288 + $0x70] sm:$0xff]
    %v304 = vld [vmem:[%s288 + $0x78] sm:$0xff]
    %s305 = scalar_lea.vmem %s2, 6
    %v306 = vld [vmem:[%s305] sm:$0x1]
    %v308 = vperm.slane %v306, 0
    %310 = vmatpush.msra.mxu0 %v304
    %311 = vmatpush.msra.mxu0 %v303
    %312 = vmatpush.msra.mxu0 %v302
    %313 = vmatpush.msra.mxu0 %v301
    %314 = vmatpush.msra.mxu0 %v300
    %315 = vmatpush.msra.mxu0 %v299
    %316 = vmatpush.msra.mxu0 %v298
    %317 = vmatpush.msra.mxu0 %v297
    %318 = vmatpush.msra.mxu0 %v296
    %319 = vmatpush.msra.mxu0 %v295
    %320 = vmatpush.msra.mxu0 %v294
    %321 = vmatpush.msra.mxu0 %v293
    %322 = vmatpush.msra.mxu0 %v292
    %323 = vmatpush.msra.mxu0 %v291
    %324 = vmatpush.msra.mxu0 %v290
    %325 = vmatpush.msra.mxu0 %v289
    %326 = vmatmul.f32.gmra.mxu0 %v287
    %v327 = vpop.f32.mrf.mxu0
    %v328 = vadd.f32 %v308, %v327
    %329 = vdwg.mxu0
    %v330 = vmax.f32 %v328, 0.0
    %s331 = scalar_lea.vmem [#allocation2], 896
    %v332 = vld [vmem:[%s331] sm:$0xff]
    %v333 = vld [vmem:[%s331 + $0x8] sm:$0xff]
    %v334 = vld [vmem:[%s331 + $0x10] sm:$0xff]
    %v335 = vld [vmem:[%s331 + $0x18] sm:$0xff]
    %v336 = vld [vmem:[%s331 + $0x20] sm:$0xff]
    %v337 = vld [vmem:[%s331 + $0x28] sm:$0xff]
    %v338 = vld [vmem:[%s331 + $0x30] sm:$0xff]
    %v339 = vld [vmem:[%s331 + $0x38] sm:$0xff]
    %v340 = vld [vmem:[%s331 + $0x40] sm:$0xff]
    %v341 = vld [vmem:[%s331 + $0x48] sm:$0xff]
    %v342 = vld [vmem:[%s331 + $0x50] sm:$0xff]
    %v343 = vld [vmem:[%s331 + $0x58] sm:$0xff]
    %v344 = vld [vmem:[%s331 + $0x60] sm:$0xff]
    %v345 = vld [vmem:[%s331 + $0x68] sm:$0xff]
    %v346 = vld [vmem:[%s331 + $0x70] sm:$0xff]
    %v347 = vld [vmem:[%s331 + $0x78] sm:$0xff]
    %s348 = scalar_lea.vmem %s2, 7
    %v349 = vld [vmem:[%s348] sm:$0x1]
    %v351 = vperm.slane %v349, 0
    %353 = vmatpush.msra.mxu0 %v347
    %354 = vmatpush.msra.mxu0 %v346
    %355 = vmatpush.msra.mxu0 %v345
    %356 = vmatpush.msra.mxu0 %v344
    %357 = vmatpush.msra.mxu0 %v343
    %358 = vmatpush.msra.mxu0 %v342
    %359 = vmatpush.msra.mxu0 %v341
    %360 = vmatpush.msra.mxu0 %v340
    %361 = vmatpush.msra.mxu0 %v339
    %362 = vmatpush.msra.mxu0 %v338
    %363 = vmatpush.msra.mxu0 %v337
    %364 = vmatpush.msra.mxu0 %v336
    %365 = vmatpush.msra.mxu0 %v335
    %366 = vmatpush.msra.mxu0 %v334
    %367 = vmatpush.msra.mxu0 %v333
    %368 = vmatpush.msra.mxu0 %v332
    %369 = vmatmul.f32.gmra.mxu0 %v330
    %v370 = vpop.f32.mrf.mxu0
    %v371 = vadd.f32 %v351, %v370
    %372 = vdwg.mxu0
    %v373 = vmax.f32 %v371, 0.0
    %v374 = vxor.u32 %v373, 2147483648
    %v375 = vmul.f32 %v374, 1.442695
    %v376 = vpow.pop %v375
    %v377 = vadd.f32 %v376, 1.0
    %v378 = vrcp.pop %v377
    %v379 = vmul.f32 %v377, %v378
    %v380 = vsub.f32 1.0, %v379
    %v381 = vmul.f32 %v378, %v380
    %v382 = vadd.f32 %v378, %v381
    %vm383 = vweird.f32 %v377
    %vm384 = vweird.f32 %v378
    %vm385 = vmor %vm383, %vm384
    %v386 = vsel %vm385, %v378, %v382
    %v387 = vand.u32 2147483647, %v377
    %vm388 = vcmp.eq.f32.partialorder %v387, 8.507059e+37
    %v389 = vand.u32 %v377, 2147483648
    %v390 = vor.u32 1.1754944e-38, %v389
    %v391 = vsel %vm388, %v390, %v386
    %v392 = vmul.f32 1.0, %v391
    %393 = vst [vmem:[#allocation5] sm:$0xff] %v392
    // Predicated region
    $region18: #{autoencoder_forward.1} parent=1 // pred_check
      _
    $region19: #{autoencoder_forward.1} parent=1 // pred_check_branch
      %395 = sbr.rel (0) target = $region21
    $region20: #{autoencoder_forward.1} parent=1 // pred_region
      %397 = vsyncadd [#allocation4], 0
      %s399 = sshll.u32 [#allocation5], 4
      %s400 = int_to_ptr.vmem [resolvable:$true] %s399
      %s401 = sshll.u32 %s3, 4
      %s402 = int_to_ptr.hbm [resolvable:$true] %s401
      %404 = dma.vmem_to_hbm [thread:$0]  %s400, 128, %s402, [#allocation4]
    $region21: #{autoencoder_forward.1} parent=1 // pred_fallthru
      _
    // Predicated region
    $region22: #{autoencoder_forward.1} parent=1 // pred_check
      _
    $region23: #{autoencoder_forward.1} parent=1 // pred_check_branch
      %406 = sbr.rel (0) target = $region25
    $region24: #{autoencoder_forward.1} parent=1 // pred_region
      %408 = dma.done [#allocation4], 128
    $region25: #{autoencoder_forward.1} parent=1 // pred_fallthru
      _
    %409 = vsyncpa [#allocation3], 1
    %410 = vsyncpa [#allocation4], 1

</llo_original>
